<compile_context>
chip_gen: v5e
topology: v5e:2x2
jax: 0.10.0
libtpu: 0.0.40
codegen_flags: <defaults>
</compile_context>

<pallas_src>
import functools

import jax
import jax.numpy as jnp
import numpy as np
from jax.experimental import pallas as pl
from jax.experimental.pallas import tpu as pltpu


# ----------------------------------------------------------------------------
# Fused kernel
# ----------------------------------------------------------------------------
def _softmax_lastdim(x):
    x = x - jnp.max(x, axis=-1, keepdims=True)
    e = jnp.exp(x)
    return e / jnp.sum(e, axis=-1, keepdims=True)   # exact divide (8 lanes)


def _fused_forward_kernel(meta, x_ref, w_ref, b_ref, out_ref):
    """Whole-network forward.

    x_ref : (B, input_dim)                    input activations
    w_ref : (n_mats, R, C)  padded weight slab (one DMA)
    b_ref : (n_bias, Cb)    padded bias slab   (one DMA)
    out_ref: (B, out_dim + L-1)  [final output | prediction errors]
    `meta` is a static Python structure of slab indices / widths.
    """
    layers = meta["layers"]
    pen_dim = meta["pen_dim"]
    npat = meta["n_patterns"]
    out_dim = meta["out_dim"]
    num_layers = len(layers)

    biases = b_ref[...]               # whole bias slab: ~1 vreg
    x = x_ref[...]

    pen_acc = None
    errs = []

    hidden = None
    raw_next = None                   # hidden_{i-1} @ w_proc_i   (no bias)
    b_next = None                     # b_proc_i row (1, hd_i)
    omc = None                        # 1 - confidence_{i-1}, (B, 1)

    for i, ly in enumerate(layers):
        hd = ly["hd"]

        # ---- hidden = ReLU(Linear(current)) -------------------------------
        if i == 0:
            in_dim = ly["in_dim"]
            w = w_ref[ly["w_proc"]][:in_dim, :hd]
            b = biases[ly["b_proc"]:ly["b_proc"] + 1, :hd]
            hidden = jnp.maximum(
                jnp.dot(x, w, preferred_element_type=jnp.float32) + b, 0.0)
        else:
            # current = hidden_{i-1} * (1 - conf)  (row scalar); row scaling
            # commutes with matmul, and hidden_{i-1}@W(+b) was already produced
            # by the previous layer's fused dot:
            hidden = jnp.maximum(omc * raw_next + b_next, 0.0)

        if i < num_layers - 1:
            hd_next = ly["hd_next"]
            fw = ly["fused_w"]                        # pen_dim + npat + hd_next

            # ---- one shared-LHS dot: [pen_feat | attn | next_pre] ---------
            Wf = w_ref[ly["w_fused"]][:hd, :fw]
            bf = biases[ly["b_fused"]:ly["b_fused"] + 1, :fw]
            big = jnp.dot(hidden, Wf, preferred_element_type=jnp.float32) + bf

            pen_feat = big[:, :pen_dim]
            attn = big[:, pen_dim:pen_dim + npat]
            next_pre = big[:, pen_dim + npat:]        # hidden @ Wproc_next + b
            actual_next = jnp.maximum(next_pre, 0.0)

            Wna = w_ref[ly["w_nattn"]][:hd_next, :npat]
            bna = biases[ly["b_nattn"]:ly["b_nattn"] + 1, :npat]
            nattn = jnp.dot(actual_next, Wna,
                            preferred_element_type=jnp.float32) + bna

            pw = _softmax_lastdim(attn)
            npw = _softmax_lastdim(nattn)
            pwcat = jnp.concatenate([pw, npw], axis=1)      # (B, 2*npat)

            # diff = npw @ next_patterns[:, :md] - pw @ patterns[:, :md]
            md = ly["md"]
            Dm = w_ref[ly["w_diff"]][:2 * npat, :md]
            diff = jnp.dot(pwcat, Dm, preferred_element_type=jnp.float32)

            pred_error = jnp.mean(diff * diff, axis=1, keepdims=True)   # (B,1)
            pred_certainty = jnp.abs(pred_error - jnp.mean(pred_error))
            temperature = jax.nn.sigmoid(pred_certainty)
            # 0.5*(tanh(-pe*t)+1) == sigmoid(-2*pe*t)
            confidence = jax.nn.sigmoid(-2.0 * pred_error * temperature)
            routing_cost = 0.1 * jnp.mean(confidence * (1.0 - confidence))
            errs.append(pred_error + routing_cost)

            pen_contrib = pen_feat * confidence
            omc = 1.0 - confidence
            b_next = bf[:, pen_dim + npat:]           # b_proc_{i+1}
            raw_next = next_pre - b_next              # hidden @ Wproc_{i+1}
        else:
            # last layer: full penultimate contribution, no routing
            Wp = w_ref[ly["w_pen"]][:hd, :pen_dim]
            bp = biases[ly["b_pen"]:ly["b_pen"] + 1, :pen_dim]
            pen_contrib = (jnp.dot(hidden, Wp,
                                   preferred_element_type=jnp.float32) + bp)
            # TODO(synk): LayerStats (pattern usage / entropy / magnitudes) are
            # module-side bookkeeping in PyTorch, not returned by forward; not
            # materialized here.

        pen_acc = pen_contrib if pen_acc is None else pen_acc + pen_contrib

    # ---- final Linear on the summed penultimate representation ------------
    Wfin = w_ref[meta["w_final"]][:pen_dim, :out_dim]
    bfin = biases[meta["b_final"]:meta["b_final"] + 1, :out_dim]
    output = jnp.dot(pen_acc, Wfin, preferred_element_type=jnp.float32) + bfin

    # single lane-contiguous store: [output | prediction errors]
    out_ref[...] = jnp.concatenate([output] + errs, axis=1)


# ----------------------------------------------------------------------------
# Wrapper: host-side slab packing, one fused pallas_call, no grid
# ----------------------------------------------------------------------------
def _round_up(v, m):
    return ((v + m - 1) // m) * m


def predictive_net_forward(x, layer_params, final_w, final_b):
    L = len(layer_params)
    B, input_dim = x.shape
    pen_dim, out_dim = final_w.shape
    npat = layer_params[0]["patterns"].shape[0]

    mats = []          # 2-D weight matrices -> one padded slab
    bias_rows = []     # (1, w) bias rows     -> one padded slab

    def add_mat(a):
        mats.append(jnp.asarray(a, jnp.float32))
        return len(mats) - 1

    def add_bias(a):
        bias_rows.append(jnp.asarray(a, jnp.float32).reshape(1, -1))
        return len(bias_rows) - 1

    layers_meta = []
    for i, p in enumerate(layer_params):
        hd = p["w_proc"].shape[1]
        ly = {"hd": hd}
        if i == 0:
            ly["in_dim"] = input_dim
            ly["w_proc"] = add_mat(p["w_proc"])
            ly["b_proc"] = add_bias(p["b_proc"])
        if i < L - 1:
            pn = layer_params[i + 1]
            hd_next = pn["w_proc"].shape[1]
            ly["hd_next"] = hd_next
            # shared-LHS fusion: [w_pen | w_attn | w_proc_next]
            Wf = jnp.concatenate([p["w_pen"], p["w_attn"], pn["w_proc"]], axis=1)
            bf = jnp.concatenate([p["b_pen"], p["b_attn"], pn["b_proc"]], axis=1)
            ly["fused_w"] = int(Wf.shape[1])
            ly["w_fused"] = add_mat(Wf)
            ly["b_fused"] = add_bias(bf)
            ly["w_nattn"] = add_mat(pn["w_next_attn"])
            ly["b_nattn"] = add_bias(pn["b_next_attn"])
            md = int(min(p["patterns"].shape[1], pn["next_patterns"].shape[1]))
            ly["md"] = md
            # pre-sliced, sign-folded diff matrix
            Dm = jnp.concatenate(
                [-p["patterns"][:, :md], pn["next_patterns"][:, :md]], axis=0)
            ly["w_diff"] = add_mat(Dm)
        else:
            ly["w_pen"] = add_mat(p["w_pen"])
            ly["b_pen"] = add_bias(p["b_pen"])
        layers_meta.append(ly)

    w_final_idx = add_mat(final_w)
    b_final_idx = add_bias(final_b)

    # pack into (n_mats, R, C) weight slab and (n_bias, Cb) bias slab
    R = _round_up(max(m.shape[0] for m in mats), 8)
    C = _round_up(max(m.shape[1] for m in mats), 128)
    wslab = jnp.stack([
        jnp.pad(m, ((0, R - m.shape[0]), (0, C - m.shape[1]))) for m in mats])
    Cb = _round_up(max(b.shape[1] for b in bias_rows), 128)
    bslab = jnp.concatenate(
        [jnp.pad(b, ((0, 0), (0, Cb - b.shape[1]))) for b in bias_rows], axis=0)

    meta = {
        "layers": tuple(layers_meta),
        "pen_dim": int(pen_dim),
        "n_patterns": int(npat),
        "out_dim": int(out_dim),
        "w_final": w_final_idx,
        "b_final": b_final_idx,
    }

    out_width = out_dim + max(L - 1, 0)
    vmem = pl.BlockSpec(memory_space=pltpu.MemorySpace.VMEM)
    res = pl.pallas_call(
        functools.partial(_fused_forward_kernel, meta),
        in_specs=[vmem, vmem, vmem],
        out_specs=vmem,
        out_shape=jax.ShapeDtypeStruct((B, out_width), jnp.float32),
    )(jnp.asarray(x, jnp.float32), wslab, bslab)

    out = res[:, :out_dim]
    errs = res[:, out_dim:] if L > 1 else None
    return out, errs


# ----------------------------------------------------------------------------
# Pure-JAX reference (same math, for the self-test)
# ----------------------------------------------------------------------------
def predictive_net_reference(x, layer_params, final_w, final_b):
    current = x
    pen_contribs = []
    errors = []
    L = len(layer_params)
    for i in range(L):
        p = layer_params[i]
        hidden = jax.nn.relu(current @ p["w_proc"] + p["b_proc"])
        if i < L - 1:
            pn = layer_params[i + 1]
            pw = jax.nn.softmax(hidden @ p["w_attn"] + p["b_attn"], axis=-1)
            my_compressed = pw @ p["patterns"]
            actual_next = jax.nn.relu(hidden @ pn["w_proc"] + pn["b_proc"])
            npw = jax.nn.softmax(actual_next @ pn["w_next_attn"] + pn["b_next_attn"], axis=-1)
            compressed_next = npw @ pn["next_patterns"]
            md = min(my_compressed.shape[1], compressed_next.shape[1])
            diff = compressed_next[:, :md] - my_compressed[:, :md]
            pred_error = jnp.mean(diff ** 2, axis=1, keepdims=True)
            pred_certainty = jnp.abs(pred_error - jnp.mean(pred_error))
            temperature = jax.nn.sigmoid(pred_certainty)
            confidence = 0.5 * (jnp.tanh(-pred_error * temperature) + 1.0)
            routing_cost = 0.1 * jnp.mean(confidence * (1.0 - confidence))
            errors.append(pred_error + routing_cost)
            pen_contribs.append((hidden @ p["w_pen"] + p["b_pen"]) * confidence)
            current = hidden * (1.0 - confidence)
        else:
            pen_contribs.append(hidden @ p["w_pen"] + p["b_pen"])
    pen = sum(pen_contribs)
    out = pen @ final_w + final_b
    errs = jnp.concatenate(errors, axis=1) if errors else None
    return out, errs


# ----------------------------------------------------------------------------
# Deterministic parameter init (shapes follow the PyTorch module's __init__)
# ----------------------------------------------------------------------------
def init_params(key, input_dim, hidden_dims, penultimate_dim, output_dim, n_patterns):
    layer_params = []
    current_dim = input_dim
    for i, hd in enumerate(hidden_dims):
        next_dim = hidden_dims[i + 1] if i < len(hidden_dims) - 1 else penultimate_dim
        key, *ks = jax.random.split(key, 11)
        p = {
            "w_proc": jax.random.normal(ks[0], (current_dim, hd), jnp.float32) / np.sqrt(current_dim),
            "b_proc": 0.01 * jax.random.normal(ks[1], (1, hd), jnp.float32),
            "patterns": jax.random.normal(ks[2], (n_patterns, hd), jnp.float32) / np.sqrt(hd),
            "w_attn": jax.random.normal(ks[3], (hd, n_patterns), jnp.float32) / np.sqrt(hd),
            "b_attn": 0.01 * jax.random.normal(ks[4], (1, n_patterns), jnp.float32),
            "next_patterns": jax.random.normal(ks[5], (n_patterns, next_dim), jnp.float32) / np.sqrt(next_dim),
            "w_next_attn": jax.random.normal(ks[6], (hd, n_patterns), jnp.float32) / np.sqrt(hd),
            "b_next_attn": 0.01 * jax.random.normal(ks[7], (1, n_patterns), jnp.float32),
            "w_pen": jax.random.normal(ks[8], (hd, penultimate_dim), jnp.float32) / np.sqrt(hd),
            "b_pen": 0.01 * jax.random.normal(ks[9], (1, penultimate_dim), jnp.float32),
        }
        layer_params.append(p)
        current_dim = hd
    key, k1, k2 = jax.random.split(key, 3)
    final_w = jax.random.normal(k1, (penultimate_dim, output_dim), jnp.float32) / np.sqrt(penultimate_dim)
    final_b = 0.01 * jax.random.normal(k2, (1, output_dim), jnp.float32)
    return layer_params, final_w, final_b


if __name__ == "__main__":
    batch = 4
    input_dim = 16
    hidden_dims = [32, 24, 16]
    penultimate_dim = 32
    output_dim = 8
    n_patterns = 8

    key = jax.random.PRNGKey(0)
    key, kx = jax.random.split(key)
    x = jax.random.normal(kx, (batch, input_dim), jnp.float32)

    layer_params, final_w, final_b = init_params(
        key, input_dim, hidden_dims, penultimate_dim, output_dim, n_patterns)

    out, errs = predictive_net_forward(x, layer_params, final_w, final_b)
    out = jax.block_until_ready(out)
    errs = jax.block_until_ready(errs)

    # sanity check against a pure-JAX reference of the same math
    ref_out, ref_errs = predictive_net_reference(x, layer_params, final_w, final_b)
    np.testing.assert_allclose(np.asarray(out), np.asarray(ref_out), rtol=1e-2, atol=1e-2)
    np.testing.assert_allclose(np.asarray(errs), np.asarray(ref_errs), rtol=1e-2, atol=1e-2)

    assert out.shape == (batch, output_dim)
    assert errs.shape == (batch, len(hidden_dims) - 1)
    print("KERNEL_OK")
</pallas_src>

<mosaic_0001>
module attributes {stable_mosaic.version = 11 : i64} {
  func.func @_fused_forward_kernel(%arg0: memref<4x16xf32, #tpu.memory_space<vmem>>, %arg1: memref<9x32x128xf32, #tpu.memory_space<vmem>>, %arg2: memref<7x128xf32, #tpu.memory_space<vmem>>, %arg3: memref<4x10xf32, #tpu.memory_space<vmem>>) attributes {dimension_semantics = [], scalar_prefetch = 0 : i64, scratch_operands = 0 : i64, tpu.core_type = #tpu.core_type<tc>} {
    %c0 = arith.constant 0 : index
    %c0_0 = arith.constant 0 : index
    %0 = vector.load %arg2[%c0, %c0_0] : memref<7x128xf32, #tpu.memory_space<vmem>>, vector<7x128xf32>
    %c0_1 = arith.constant 0 : index
    %c0_2 = arith.constant 0 : index
    %1 = vector.load %arg0[%c0_1, %c0_2] : memref<4x16xf32, #tpu.memory_space<vmem>>, vector<4x16xf32>
    %c0_3 = arith.constant 0 : index
    %c0_4 = arith.constant 0 : index
    %c0_5 = arith.constant 0 : index
    %2 = vector.load %arg1[%c0_3, %c0_4, %c0_5] : memref<9x32x128xf32, #tpu.memory_space<vmem>>, vector<1x32x128xf32>
    %3 = vector.shape_cast %2 : vector<1x32x128xf32> to vector<32x128xf32>
    %4 = vector.extract_strided_slice %3 {offsets = [0, 0], sizes = [16, 32], strides = [1, 1]} : vector<32x128xf32> to vector<16x32xf32>
    %5 = vector.extract_strided_slice %0 {offsets = [0, 0], sizes = [1, 32], strides = [1, 1]} : vector<7x128xf32> to vector<1x32xf32>
    %cst = arith.constant dense<0.000000e+00> : vector<4x32xf32>
    %6 = tpu.matmul %1, %4, %cst {dimension_numbers = #tpu.dot_dimension_numbers<[1], [0], [0], [1], [0, 0, 1, 1], [], []>} : vector<4x16xf32>, vector<16x32xf32>, vector<4x32xf32> -> vector<4x32xf32>
    %7 = vector.broadcast %5 : vector<1x32xf32> to vector<4x32xf32>
    %8 = arith.addf %6, %7 : vector<4x32xf32>
    %cst_6 = arith.constant 0.000000e+00 : f32
    %9 = vector.broadcast %cst_6 : f32 to vector<4x32xf32>
    %10 = arith.maximumf %8, %9 : vector<4x32xf32>
    %c1 = arith.constant 1 : index
    %c0_7 = arith.constant 0 : index
    %c0_8 = arith.constant 0 : index
    %11 = vector.load %arg1[%c1, %c0_7, %c0_8] : memref<9x32x128xf32, #tpu.memory_space<vmem>>, vector<1x32x128xf32>
    %12 = vector.shape_cast %11 : vector<1x32x128xf32> to vector<32x128xf32>
    %13 = vector.extract_strided_slice %12 {offsets = [0, 0], sizes = [32, 64], strides = [1, 1]} : vector<32x128xf32> to vector<32x64xf32>
    %14 = vector.extract_strided_slice %0 {offsets = [1, 0], sizes = [1, 64], strides = [1, 1]} : vector<7x128xf32> to vector<1x64xf32>
    %cst_9 = arith.constant dense<0.000000e+00> : vector<4x64xf32>
    %15 = tpu.matmul %10, %13, %cst_9 {dimension_numbers = #tpu.dot_dimension_numbers<[1], [0], [0], [1], [0, 0, 1, 1], [], []>} : vector<4x32xf32>, vector<32x64xf32>, vector<4x64xf32> -> vector<4x64xf32>
    %16 = vector.broadcast %14 : vector<1x64xf32> to vector<4x64xf32>
    %17 = arith.addf %15, %16 : vector<4x64xf32>
    %18 = vector.extract_strided_slice %17 {offsets = [0, 0], sizes = [4, 32], strides = [1, 1]} : vector<4x64xf32> to vector<4x32xf32>
    %19 = vector.extract_strided_slice %17 {offsets = [0, 32], sizes = [4, 8], strides = [1, 1]} : vector<4x64xf32> to vector<4x8xf32>
    %20 = vector.extract_strided_slice %17 {offsets = [0, 40], sizes = [4, 24], strides = [1, 1]} : vector<4x64xf32> to vector<4x24xf32>
    %cst_10 = arith.constant 0.000000e+00 : f32
    %21 = vector.broadcast %cst_10 : f32 to vector<4x24xf32>
    %22 = arith.maximumf %20, %21 : vector<4x24xf32>
    %c2 = arith.constant 2 : index
    %c0_11 = arith.constant 0 : index
    %c0_12 = arith.constant 0 : index
    %23 = vector.load %arg1[%c2, %c0_11, %c0_12] : memref<9x32x128xf32, #tpu.memory_space<vmem>>, vector<1x32x128xf32>
    %24 = vector.shape_cast %23 : vector<1x32x128xf32> to vector<32x128xf32>
    %25 = vector.extract_strided_slice %24 {offsets = [0, 0], sizes = [24, 8], strides = [1, 1]} : vector<32x128xf32> to vector<24x8xf32>
    %26 = vector.extract_strided_slice %0 {offsets = [2, 0], sizes = [1, 8], strides = [1, 1]} : vector<7x128xf32> to vector<1x8xf32>
    %cst_13 = arith.constant dense<0.000000e+00> : vector<4x8xf32>
    %27 = tpu.matmul %22, %25, %cst_13 {dimension_numbers = #tpu.dot_dimension_numbers<[1], [0], [0], [1], [0, 0, 1, 1], [], []>} : vector<4x24xf32>, vector<24x8xf32>, vector<4x8xf32> -> vector<4x8xf32>
    %28 = vector.broadcast %26 : vector<1x8xf32> to vector<4x8xf32>
    %29 = arith.addf %27, %28 : vector<4x8xf32>
    %cst_14 = arith.constant dense<0xFF800000> : vector<4xf32>
    %30 = vector.multi_reduction <maximumf>, %19, %cst_14 [1] : vector<4x8xf32> to vector<4xf32>
    %31 = vector.shape_cast %30 : vector<4xf32> to vector<4x1xf32>
    %32 = vector.broadcast %31 : vector<4x1xf32> to vector<4x8xf32>
    %33 = arith.subf %19, %32 : vector<4x8xf32>
    %34 = math.exp %33 : vector<4x8xf32>
    %cst_15 = arith.constant dense<0.000000e+00> : vector<4xf32>
    %35 = vector.multi_reduction <add>, %34, %cst_15 [1] : vector<4x8xf32> to vector<4xf32>
    %36 = vector.shape_cast %35 : vector<4xf32> to vector<4x1xf32>
    %37 = vector.broadcast %36 : vector<4x1xf32> to vector<4x8xf32>
    %38 = arith.divf %34, %37 : vector<4x8xf32>
    %cst_16 = arith.constant dense<0xFF800000> : vector<4xf32>
    %39 = vector.multi_reduction <maximumf>, %29, %cst_16 [1] : vector<4x8xf32> to vector<4xf32>
    %40 = vector.shape_cast %39 : vector<4xf32> to vector<4x1xf32>
    %41 = vector.broadcast %40 : vector<4x1xf32> to vector<4x8xf32>
    %42 = arith.subf %29, %41 : vector<4x8xf32>
    %43 = math.exp %42 : vector<4x8xf32>
    %cst_17 = arith.constant dense<0.000000e+00> : vector<4xf32>
    %44 = vector.multi_reduction <add>, %43, %cst_17 [1] : vector<4x8xf32> to vector<4xf32>
    %45 = vector.shape_cast %44 : vector<4xf32> to vector<4x1xf32>
    %46 = vector.broadcast %45 : vector<4x1xf32> to vector<4x8xf32>
    %47 = arith.divf %43, %46 : vector<4x8xf32>
    %48 = tpu.concatenate %38, %47 in 1 : vector<4x8xf32>, vector<4x8xf32> -> vector<4x16xf32>
    %c3 = arith.constant 3 : index
    %c0_18 = arith.constant 0 : index
    %c0_19 = arith.constant 0 : index
    %49 = vector.load %arg1[%c3, %c0_18, %c0_19] : memref<9x32x128xf32, #tpu.memory_space<vmem>>, vector<1x32x128xf32>
    %50 = vector.shape_cast %49 : vector<1x32x128xf32> to vector<32x128xf32>
    %51 = vector.extract_strided_slice %50 {offsets = [0, 0], sizes = [16, 16], strides = [1, 1]} : vector<32x128xf32> to vector<16x16xf32>
    %cst_20 = arith.constant dense<0.000000e+00> : vector<4x16xf32>
    %52 = tpu.matmul %48, %51, %cst_20 {dimension_numbers = #tpu.dot_dimension_numbers<[1], [0], [0], [1], [0, 0, 1, 1], [], []>} : vector<4x16xf32>, vector<16x16xf32>, vector<4x16xf32> -> vector<4x16xf32>
    %53 = arith.mulf %52, %52 : vector<4x16xf32>
    %cst_21 = arith.constant dense<0.000000e+00> : vector<4xf32>
    %54 = vector.multi_reduction <add>, %53, %cst_21 [1] : vector<4x16xf32> to vector<4xf32>
    %55 = vector.shape_cast %54 : vector<4xf32> to vector<4x1xf32>
    %cst_22 = arith.constant 1.600000e+01 : f32
    %56 = vector.broadcast %cst_22 : f32 to vector<4x1xf32>
    %57 = arith.divf %55, %56 : vector<4x1xf32>
    %58 = vector.shape_cast %57 : vector<4x1xf32> to vector<1x4x1xf32>
    %cst_23 = arith.constant dense<0.000000e+00> : vector<1xf32>
    %59 = vector.multi_reduction <add>, %58, %cst_23 [1, 2] : vector<1x4x1xf32> to vector<1xf32>
    %60 = vector.shape_cast %59 : vector<1xf32> to vector<1x1x1xf32>
    %61 = vector.extract %60[0, 0, 0] : f32 from vector<1x1x1xf32>
    %cst_24 = arith.constant 4.000000e+00 : f32
    %62 = arith.divf %61, %cst_24 : f32
    %63 = vector.broadcast %62 : f32 to vector<4x1xf32>
    %64 = arith.subf %57, %63 : vector<4x1xf32>
    %65 = math.absf %64 : vector<4x1xf32>
    %66 = arith.negf %65 : vector<4x1xf32>
    %67 = math.exp %66 : vector<4x1xf32>
    %cst_25 = arith.constant 1.000000e+00 : f32
    %68 = vector.broadcast %cst_25 : f32 to vector<4x1xf32>
    %69 = arith.addf %68, %67 : vector<4x1xf32>
    %70 = arith.divf %68, %69 : vector<4x1xf32>
    %cst_26 = arith.constant -2.000000e+00 : f32
    %71 = vector.broadcast %cst_26 : f32 to vector<4x1xf32>
    %72 = arith.mulf %71, %57 : vector<4x1xf32>
    %73 = arith.mulf %72, %70 : vector<4x1xf32>
    %74 = arith.negf %73 : vector<4x1xf32>
    %75 = math.exp %74 : vector<4x1xf32>
    %cst_27 = arith.constant 1.000000e+00 : f32
    %76 = vector.broadcast %cst_27 : f32 to vector<4x1xf32>
    %77 = arith.addf %76, %75 : vector<4x1xf32>
    %78 = arith.divf %76, %77 : vector<4x1xf32>
    %cst_28 = arith.constant 1.000000e+00 : f32
    %79 = vector.broadcast %cst_28 : f32 to vector<4x1xf32>
    %80 = arith.subf %79, %78 : vector<4x1xf32>
    %81 = arith.mulf %78, %80 : vector<4x1xf32>
    %82 = vector.shape_cast %81 : vector<4x1xf32> to vector<1x4x1xf32>
    %cst_29 = arith.constant dense<0.000000e+00> : vector<1xf32>
    %83 = vector.multi_reduction <add>, %82, %cst_29 [1, 2] : vector<1x4x1xf32> to vector<1xf32>
    %84 = vector.shape_cast %83 : vector<1xf32> to vector<1x1x1xf32>
    %85 = vector.extract %84[0, 0, 0] : f32 from vector<1x1x1xf32>
    %cst_30 = arith.constant 4.000000e+00 : f32
    %86 = arith.divf %85, %cst_30 : f32
    %cst_31 = arith.constant 1.000000e-01 : f32
    %87 = arith.mulf %cst_31, %86 : f32
    %88 = vector.broadcast %87 : f32 to vector<4x1xf32>
    %89 = arith.addf %57, %88 : vector<4x1xf32>
    %90 = vector.broadcast %78 : vector<4x1xf32> to vector<4x32xf32>
    %91 = arith.mulf %18, %90 : vector<4x32xf32>
    %cst_32 = arith.constant 1.000000e+00 : f32
    %92 = vector.broadcast %cst_32 : f32 to vector<4x1xf32>
    %93 = arith.subf %92, %78 : vector<4x1xf32>
    %94 = vector.extract_strided_slice %14 {offsets = [0, 40], sizes = [1, 24], strides = [1, 1]} : vector<1x64xf32> to vector<1x24xf32>
    %95 = vector.broadcast %94 : vector<1x24xf32> to vector<4x24xf32>
    %96 = arith.subf %20, %95 : vector<4x24xf32>
    %97 = vector.broadcast %93 : vector<4x1xf32> to vector<4x24xf32>
    %98 = arith.mulf %97, %96 : vector<4x24xf32>
    %99 = vector.broadcast %94 : vector<1x24xf32> to vector<4x24xf32>
    %100 = arith.addf %98, %99 : vector<4x24xf32>
    %cst_33 = arith.constant 0.000000e+00 : f32
    %101 = vector.broadcast %cst_33 : f32 to vector<4x24xf32>
    %102 = arith.maximumf %100, %101 : vector<4x24xf32>
    %c4 = arith.constant 4 : index
    %c0_34 = arith.constant 0 : index
    %c0_35 = arith.constant 0 : index
    %103 = vector.load %arg1[%c4, %c0_34, %c0_35] : memref<9x32x128xf32, #tpu.memory_space<vmem>>, vector<1x32x128xf32>
    %104 = vector.shape_cast %103 : vector<1x32x128xf32> to vector<32x128xf32>
    %105 = vector.extract_strided_slice %104 {offsets = [0, 0], sizes = [24, 56], strides = [1, 1]} : vector<32x128xf32> to vector<24x56xf32>
    %106 = vector.extract_strided_slice %0 {offsets = [3, 0], sizes = [1, 56], strides = [1, 1]} : vector<7x128xf32> to vector<1x56xf32>
    %cst_36 = arith.constant dense<0.000000e+00> : vector<4x56xf32>
    %107 = tpu.matmul %102, %105, %cst_36 {dimension_numbers = #tpu.dot_dimension_numbers<[1], [0], [0], [1], [0, 0, 1, 1], [], []>} : vector<4x24xf32>, vector<24x56xf32>, vector<4x56xf32> -> vector<4x56xf32>
    %108 = vector.broadcast %106 : vector<1x56xf32> to vector<4x56xf32>
    %109 = arith.addf %107, %108 : vector<4x56xf32>
    %110 = vector.extract_strided_slice %109 {offsets = [0, 0], sizes = [4, 32], strides = [1, 1]} : vector<4x56xf32> to vector<4x32xf32>
    %111 = vector.extract_strided_slice %109 {offsets = [0, 32], sizes = [4, 8], strides = [1, 1]} : vector<4x56xf32> to vector<4x8xf32>
    %112 = vector.extract_strided_slice %109 {offsets = [0, 40], sizes = [4, 16], strides = [1, 1]} : vector<4x56xf32> to vector<4x16xf32>
    %cst_37 = arith.constant 0.000000e+00 : f32
    %113 = vector.broadcast %cst_37 : f32 to vector<4x16xf32>
    %114 = arith.maximumf %112, %113 : vector<4x16xf32>
    %c5 = arith.constant 5 : index
    %c0_38 = arith.constant 0 : index
    %c0_39 = arith.constant 0 : index
    %115 = vector.load %arg1[%c5, %c0_38, %c0_39] : memref<9x32x128xf32, #tpu.memory_space<vmem>>, vector<1x32x128xf32>
    %116 = vector.shape_cast %115 : vector<1x32x128xf32> to vector<32x128xf32>
    %117 = vector.extract_strided_slice %116 {offsets = [0, 0], sizes = [16, 8], strides = [1, 1]} : vector<32x128xf32> to vector<16x8xf32>
    %118 = vector.extract_strided_slice %0 {offsets = [4, 0], sizes = [1, 8], strides = [1, 1]} : vector<7x128xf32> to vector<1x8xf32>
    %cst_40 = arith.constant dense<0.000000e+00> : vector<4x8xf32>
    %119 = tpu.matmul %114, %117, %cst_40 {dimension_numbers = #tpu.dot_dimension_numbers<[1], [0], [0], [1], [0, 0, 1, 1], [], []>} : vector<4x16xf32>, vector<16x8xf32>, vector<4x8xf32> -> vector<4x8xf32>
    %120 = vector.broadcast %118 : vector<1x8xf32> to vector<4x8xf32>
    %121 = arith.addf %119, %120 : vector<4x8xf32>
    %cst_41 = arith.constant dense<0xFF800000> : vector<4xf32>
    %122 = vector.multi_reduction <maximumf>, %111, %cst_41 [1] : vector<4x8xf32> to vector<4xf32>
    %123 = vector.shape_cast %122 : vector<4xf32> to vector<4x1xf32>
    %124 = vector.broadcast %123 : vector<4x1xf32> to vector<4x8xf32>
    %125 = arith.subf %111, %124 : vector<4x8xf32>
    %126 = math.exp %125 : vector<4x8xf32>
    %cst_42 = arith.constant dense<0.000000e+00> : vector<4xf32>
    %127 = vector.multi_reduction <add>, %126, %cst_42 [1] : vector<4x8xf32> to vector<4xf32>
    %128 = vector.shape_cast %127 : vector<4xf32> to vector<4x1xf32>
    %129 = vector.broadcast %128 : vector<4x1xf32> to vector<4x8xf32>
    %130 = arith.divf %126, %129 : vector<4x8xf32>
    %cst_43 = arith.constant dense<0xFF800000> : vector<4xf32>
    %131 = vector.multi_reduction <maximumf>, %121, %cst_43 [1] : vector<4x8xf32> to vector<4xf32>
    %132 = vector.shape_cast %131 : vector<4xf32> to vector<4x1xf32>
    %133 = vector.broadcast %132 : vector<4x1xf32> to vector<4x8xf32>
    %134 = arith.subf %121, %133 : vector<4x8xf32>
    %135 = math.exp %134 : vector<4x8xf32>
    %cst_44 = arith.constant dense<0.000000e+00> : vector<4xf32>
    %136 = vector.multi_reduction <add>, %135, %cst_44 [1] : vector<4x8xf32> to vector<4xf32>
    %137 = vector.shape_cast %136 : vector<4xf32> to vector<4x1xf32>
    %138 = vector.broadcast %137 : vector<4x1xf32> to vector<4x8xf32>
    %139 = arith.divf %135, %138 : vector<4x8xf32>
    %140 = tpu.concatenate %130, %139 in 1 : vector<4x8xf32>, vector<4x8xf32> -> vector<4x16xf32>
    %c6 = arith.constant 6 : index
    %c0_45 = arith.constant 0 : index
    %c0_46 = arith.constant 0 : index
    %141 = vector.load %arg1[%c6, %c0_45, %c0_46] : memref<9x32x128xf32, #tpu.memory_space<vmem>>, vector<1x32x128xf32>
    %142 = vector.shape_cast %141 : vector<1x32x128xf32> to vector<32x128xf32>
    %143 = vector.extract_strided_slice %142 {offsets = [0, 0], sizes = [16, 24], strides = [1, 1]} : vector<32x128xf32> to vector<16x24xf32>
    %cst_47 = arith.constant dense<0.000000e+00> : vector<4x24xf32>
    %144 = tpu.matmul %140, %143, %cst_47 {dimension_numbers = #tpu.dot_dimension_numbers<[1], [0], [0], [1], [0, 0, 1, 1], [], []>} : vector<4x16xf32>, vector<16x24xf32>, vector<4x24xf32> -> vector<4x24xf32>
    %145 = arith.mulf %144, %144 : vector<4x24xf32>
    %cst_48 = arith.constant dense<0.000000e+00> : vector<4xf32>
    %146 = vector.multi_reduction <add>, %145, %cst_48 [1] : vector<4x24xf32> to vector<4xf32>
    %147 = vector.shape_cast %146 : vector<4xf32> to vector<4x1xf32>
    %cst_49 = arith.constant 2.400000e+01 : f32
    %148 = vector.broadcast %cst_49 : f32 to vector<4x1xf32>
    %149 = arith.divf %147, %148 : vector<4x1xf32>
    %150 = vector.shape_cast %149 : vector<4x1xf32> to vector<1x4x1xf32>
    %cst_50 = arith.constant dense<0.000000e+00> : vector<1xf32>
    %151 = vector.multi_reduction <add>, %150, %cst_50 [1, 2] : vector<1x4x1xf32> to vector<1xf32>
    %152 = vector.shape_cast %151 : vector<1xf32> to vector<1x1x1xf32>
    %153 = vector.extract %152[0, 0, 0] : f32 from vector<1x1x1xf32>
    %cst_51 = arith.constant 4.000000e+00 : f32
    %154 = arith.divf %153, %cst_51 : f32
    %155 = vector.broadcast %154 : f32 to vector<4x1xf32>
    %156 = arith.subf %149, %155 : vector<4x1xf32>
    %157 = math.absf %156 : vector<4x1xf32>
    %158 = arith.negf %157 : vector<4x1xf32>
    %159 = math.exp %158 : vector<4x1xf32>
    %cst_52 = arith.constant 1.000000e+00 : f32
    %160 = vector.broadcast %cst_52 : f32 to vector<4x1xf32>
    %161 = arith.addf %160, %159 : vector<4x1xf32>
    %162 = arith.divf %160, %161 : vector<4x1xf32>
    %cst_53 = arith.constant -2.000000e+00 : f32
    %163 = vector.broadcast %cst_53 : f32 to vector<4x1xf32>
    %164 = arith.mulf %163, %149 : vector<4x1xf32>
    %165 = arith.mulf %164, %162 : vector<4x1xf32>
    %166 = arith.negf %165 : vector<4x1xf32>
    %167 = math.exp %166 : vector<4x1xf32>
    %cst_54 = arith.constant 1.000000e+00 : f32
    %168 = vector.broadcast %cst_54 : f32 to vector<4x1xf32>
    %169 = arith.addf %168, %167 : vector<4x1xf32>
    %170 = arith.divf %168, %169 : vector<4x1xf32>
    %cst_55 = arith.constant 1.000000e+00 : f32
    %171 = vector.broadcast %cst_55 : f32 to vector<4x1xf32>
    %172 = arith.subf %171, %170 : vector<4x1xf32>
    %173 = arith.mulf %170, %172 : vector<4x1xf32>
    %174 = vector.shape_cast %173 : vector<4x1xf32> to vector<1x4x1xf32>
    %cst_56 = arith.constant dense<0.000000e+00> : vector<1xf32>
    %175 = vector.multi_reduction <add>, %174, %cst_56 [1, 2] : vector<1x4x1xf32> to vector<1xf32>
    %176 = vector.shape_cast %175 : vector<1xf32> to vector<1x1x1xf32>
    %177 = vector.extract %176[0, 0, 0] : f32 from vector<1x1x1xf32>
    %cst_57 = arith.constant 4.000000e+00 : f32
    %178 = arith.divf %177, %cst_57 : f32
    %cst_58 = arith.constant 1.000000e-01 : f32
    %179 = arith.mulf %cst_58, %178 : f32
    %180 = vector.broadcast %179 : f32 to vector<4x1xf32>
    %181 = arith.addf %149, %180 : vector<4x1xf32>
    %182 = vector.broadcast %170 : vector<4x1xf32> to vector<4x32xf32>
    %183 = arith.mulf %110, %182 : vector<4x32xf32>
    %cst_59 = arith.constant 1.000000e+00 : f32
    %184 = vector.broadcast %cst_59 : f32 to vector<4x1xf32>
    %185 = arith.subf %184, %170 : vector<4x1xf32>
    %186 = vector.extract_strided_slice %106 {offsets = [0, 40], sizes = [1, 16], strides = [1, 1]} : vector<1x56xf32> to vector<1x16xf32>
    %187 = vector.broadcast %186 : vector<1x16xf32> to vector<4x16xf32>
    %188 = arith.subf %112, %187 : vector<4x16xf32>
    %189 = arith.addf %91, %183 : vector<4x32xf32>
    %190 = vector.broadcast %185 : vector<4x1xf32> to vector<4x16xf32>
    %191 = arith.mulf %190, %188 : vector<4x16xf32>
    %192 = vector.broadcast %186 : vector<1x16xf32> to vector<4x16xf32>
    %193 = arith.addf %191, %192 : vector<4x16xf32>
    %cst_60 = arith.constant 0.000000e+00 : f32
    %194 = vector.broadcast %cst_60 : f32 to vector<4x16xf32>
    %195 = arith.maximumf %193, %194 : vector<4x16xf32>
    %c7 = arith.constant 7 : index
    %c0_61 = arith.constant 0 : index
    %c0_62 = arith.constant 0 : index
    %196 = vector.load %arg1[%c7, %c0_61, %c0_62] : memref<9x32x128xf32, #tpu.memory_space<vmem>>, vector<1x32x128xf32>
    %197 = vector.shape_cast %196 : vector<1x32x128xf32> to vector<32x128xf32>
    %198 = vector.extract_strided_slice %197 {offsets = [0, 0], sizes = [16, 32], strides = [1, 1]} : vector<32x128xf32> to vector<16x32xf32>
    %199 = vector.extract_strided_slice %0 {offsets = [5, 0], sizes = [1, 32], strides = [1, 1]} : vector<7x128xf32> to vector<1x32xf32>
    %cst_63 = arith.constant dense<0.000000e+00> : vector<4x32xf32>
    %200 = tpu.matmul %195, %198, %cst_63 {dimension_numbers = #tpu.dot_dimension_numbers<[1], [0], [0], [1], [0, 0, 1, 1], [], []>} : vector<4x16xf32>, vector<16x32xf32>, vector<4x32xf32> -> vector<4x32xf32>
    %201 = vector.broadcast %199 : vector<1x32xf32> to vector<4x32xf32>
    %202 = arith.addf %200, %201 : vector<4x32xf32>
    %203 = arith.addf %189, %202 : vector<4x32xf32>
    %c8 = arith.constant 8 : index
    %c0_64 = arith.constant 0 : index
    %c0_65 = arith.constant 0 : index
    %204 = vector.load %arg1[%c8, %c0_64, %c0_65] : memref<9x32x128xf32, #tpu.memory_space<vmem>>, vector<1x32x128xf32>
    %205 = vector.shape_cast %204 : vector<1x32x128xf32> to vector<32x128xf32>
    %206 = vector.extract_strided_slice %205 {offsets = [0, 0], sizes = [32, 8], strides = [1, 1]} : vector<32x128xf32> to vector<32x8xf32>
    %207 = vector.extract_strided_slice %0 {offsets = [6, 0], sizes = [1, 8], strides = [1, 1]} : vector<7x128xf32> to vector<1x8xf32>
    %cst_66 = arith.constant dense<0.000000e+00> : vector<4x8xf32>
    %208 = tpu.matmul %203, %206, %cst_66 {dimension_numbers = #tpu.dot_dimension_numbers<[1], [0], [0], [1], [0, 0, 1, 1], [], []>} : vector<4x32xf32>, vector<32x8xf32>, vector<4x8xf32> -> vector<4x8xf32>
    %209 = vector.broadcast %207 : vector<1x8xf32> to vector<4x8xf32>
    %210 = arith.addf %208, %209 : vector<4x8xf32>
    %211 = tpu.concatenate %210, %89, %181 in 1 : vector<4x8xf32>, vector<4x1xf32>, vector<4x1xf32> -> vector<4x10xf32>
    %c0_67 = arith.constant 0 : index
    %c0_68 = arith.constant 0 : index
    %212 = vector.load %arg3[%c0_67, %c0_68] : memref<4x10xf32, #tpu.memory_space<vmem>>, vector<4x10xf32>
    tpu.vector_store %arg3[%c0_67, %c0_68], %211 {strides = array<i32>} : memref<4x10xf32, #tpu.memory_space<vmem>>, vector<4x10xf32>,
    return
  }
}

</mosaic_0001>

<llo_original>
// kernel: tpu_custom_call.1
$region0: #{tpu_custom_call.1}
  #allocation0 [shape = 'u32[]', space=smem, size = 0x4, offset = 0x4, fixed_abs, tag = 'smem constant byte address 0x4 - core index']
  #allocation1 [shape = 'u32[72,128]{1,0:T(1,128)}', space=vmem, size = 0x9000, scoped, tag = 'internal scratch']
  %s0 = inlined_call_operand.hbm [shape: f32[4,16], index: 0, kind: input, shape index: {}]
  %s1 = inlined_call_operand.hbm [shape: f32[9,32,128], index: 1, kind: input, shape index: {}]
  %s2 = inlined_call_operand.hbm [shape: f32[7,128], index: 2, kind: input, shape index: {}]
  %s3 = inlined_call_operand.hbm [shape: f32[4,10], index: 3, kind: output, shape index: {}]
  %s4 = sld [smem:[#allocation0]]
  $region34: #{tpu_custom_call.1} parent=0
    _
  %s6 = ssub.s32 1, %s4
  %s7 = scalar_select 0, %s6, %s4
  $region1: #{tpu_custom_call.1} parent=0
    #allocation2 [shape = 'u8[2048]{0}', space=vmem, size = 0x800, scoped, tag = 'input window, operand 0, single buffered']
    #allocation3 [shape = 's32[1]{0}', space=sflag, size = 0x4, scoped, tag = 'scoped memory for tpu_custom_call.1']
    #allocation4 [shape = 's32[1]{0}', space=sflag, size = 0x4, scoped, tag = 'scoped memory for tpu_custom_call.1']
    #allocation5 [shape = 'u8[147456]{0}', space=vmem, size = 0x24000, scoped, tag = 'input window, operand 1, single buffered']
    #allocation6 [shape = 's32[1]{0}', space=sflag, size = 0x4, scoped, tag = 'scoped memory for tpu_custom_call.1']
    #allocation7 [shape = 'u8[4096]{0}', space=vmem, size = 0x1000, scoped, tag = 'input window, operand 2, single buffered']
    #allocation8 [shape = 'u8[2048]{0}', space=vmem, size = 0x800, scoped, tag = 'output window, operand 0, single buffered']
    %8 = vsyncpa [#allocation3], 0
    %9 = vsyncpa [#allocation6], 0
    %10 = vsyncpa [#allocation4], 0
    // Predicated region
    $region2: #{tpu_custom_call.1} parent=1 // pred_check
      _
    $region3: #{tpu_custom_call.1} parent=1 // pred_check_branch
      %12 = sbr.rel (0) target = $region5
    $region4: #{tpu_custom_call.1} parent=1 // pred_region
      %14 = vsyncadd [#allocation3], 0
      %s16 = sshll.u32 %s0, 4
      %s17 = int_to_ptr.hbm [resolvable:$true] %s16
      %s18 = sshll.u32 [#allocation2], 4
      %s19 = int_to_ptr.vmem [resolvable:$true] %s18
      %21 = dma.hbm_to_vmem [thread:$0]  %s17, 64, %s19, [#allocation3]
    $region5: #{tpu_custom_call.1} parent=1 // pred_fallthru
      _
    // Predicated region
    $region6: #{tpu_custom_call.1} parent=1 // pred_check
      _
    $region7: #{tpu_custom_call.1} parent=1 // pred_check_branch
      %23 = sbr.rel (0) target = $region9
    $region8: #{tpu_custom_call.1} parent=1 // pred_region
      %25 = vsyncadd [#allocation6], 0
      %s26 = sshll.u32 %s1, 4
      %s27 = int_to_ptr.hbm [resolvable:$true] %s26
      %s28 = sshll.u32 [#allocation5], 4
      %s29 = int_to_ptr.vmem [resolvable:$true] %s28
      %34 = dma.hbm_to_vmem [thread:$0]  %s27, 4608, %s29, [#allocation6], 128, 128, 8
    $region9: #{tpu_custom_call.1} parent=1 // pred_fallthru
      _
    // Predicated region
    $region10: #{tpu_custom_call.1} parent=1 // pred_check
      _
    $region11: #{tpu_custom_call.1} parent=1 // pred_check_branch
      %36 = sbr.rel (0) target = $region13
    $region12: #{tpu_custom_call.1} parent=1 // pred_region
      %38 = vsyncadd [#allocation6], 0
      %s40 = sshll.u32 %s2, 4
      %s41 = int_to_ptr.hbm [resolvable:$true] %s40
      %s42 = sshll.u32 [#allocation7], 4
      %s43 = int_to_ptr.vmem [resolvable:$true] %s42
      %45 = dma.hbm_to_vmem [thread:$0]  %s41, 128, %s43, [#allocation6]
    $region13: #{tpu_custom_call.1} parent=1 // pred_fallthru
      _
    // Predicated region
    $region14: #{tpu_custom_call.1} parent=1 // pred_check
      _
    $region15: #{tpu_custom_call.1} parent=1 // pred_check_branch
      %47 = sbr.rel (0) target = $region17
    $region16: #{tpu_custom_call.1} parent=1 // pred_region
      %49 = dma.done [#allocation3], 64
    $region17: #{tpu_custom_call.1} parent=1 // pred_fallthru
      _
    // Predicated region
    $region18: #{tpu_custom_call.1} parent=1 // pred_check
      _
    $region19: #{tpu_custom_call.1} parent=1 // pred_check_branch
      %51 = sbr.rel (0) target = $region21
    $region20: #{tpu_custom_call.1} parent=1 // pred_region
      %53 = dma.done [#allocation6], 4608
    $region21: #{tpu_custom_call.1} parent=1 // pred_fallthru
      _
    // Predicated region
    $region22: #{tpu_custom_call.1} parent=1 // pred_check
      _
    $region23: #{tpu_custom_call.1} parent=1 // pred_check_branch
      %55 = sbr.rel (0) target = $region25
    $region24: #{tpu_custom_call.1} parent=1 // pred_region
      %57 = dma.done [#allocation6], 128
    $region25: #{tpu_custom_call.1} parent=1 // pred_fallthru
      _
    %v58 = vld [vmem:[#allocation7] sm:$0x7f]
    %v59 = vld [vmem:[#allocation2] sm:$0xf]
    %v60 = vld [vmem:[#allocation5] sm:$0xff]
    %v61 = vld [vmem:[#allocation5 + $0x8] sm:$0xff]
    %v62 = vperm.slane %v58, 0
    %vm63 = vcmask 130048
    %v65 = vsel %vm63, %v59, 0
    %67 = vmatpush.msra.mxu0 0.0
    %68 = vmatpush.msra.mxu0 0.0
    %69 = vmatpush.msra.mxu0 0.0
    %70 = vmatpush.msra.mxu0 0.0
    %71 = vmatpush.msra.mxu0 0.0
    %72 = vmatpush.msra.mxu0 0.0
    %73 = vmatpush.msra.mxu0 0.0
    %74 = vmatpush.msra.mxu0 0.0
    %75 = vmatpush.msra.mxu0 0.0
    %76 = vmatpush.msra.mxu0 0.0
    %77 = vmatpush.msra.mxu0 0.0
    %78 = vmatpush.msra.mxu0 0.0
    %79 = vmatpush.msra.mxu0 0.0
    %80 = vmatpush.msra.mxu0 0.0
    %81 = vmatpush.msra.mxu0 %v61
    %82 = vmatpush.msra.mxu0 %v60
    %83 = vmatmul.f32.gmra.mxu0 %v65
    %v84 = vpop.f32.mrf.mxu0
    %v85 = vadd.f32 %v62, %v84
    %86 = vdwg.mxu0
    %v87 = vmax.f32 %v85, 0.0
    %s88 = scalar_lea.vmem [#allocation5], 32
    %v89 = vld [vmem:[%s88] sm:$0xff]
    %v90 = vld [vmem:[%s88 + $0x8] sm:$0xff]
    %v91 = vld [vmem:[%s88 + $0x10] sm:$0xff]
    %v92 = vld [vmem:[%s88 + $0x18] sm:$0xff]
    %v93 = vperm.slane %v58, 1
    %vm94 = vcmask 261120
    %v96 = vsel %vm94, %v87, 0
    %98 = vmatpush.msra.mxu0 0.0
    %99 = vmatpush.msra.mxu0 0.0
    %100 = vmatpush.msra.mxu0 0.0
    %101 = vmatpush.msra.mxu0 0.0
    %102 = vmatpush.msra.mxu0 0.0
    %103 = vmatpush.msra.mxu0 0.0
    %104 = vmatpush.msra.mxu0 0.0
    %105 = vmatpush.msra.mxu0 0.0
    %106 = vmatpush.msra.mxu0 0.0
    %107 = vmatpush.msra.mxu0 0.0
    %108 = vmatpush.msra.mxu0 0.0
    %109 = vmatpush.msra.mxu0 0.0
    %110 = vmatpush.msra.mxu0 %v92
    %111 = vmatpush.msra.mxu0 %v91
    %112 = vmatpush.msra.mxu0 %v90
    %113 = vmatpush.msra.mxu0 %v89
    %114 = vmatmul.f32.gmra.mxu0 %v96
    %v115 = vpop.f32.mrf.mxu0
    %v116 = vadd.f32 %v93, %v115
    %117 = vdwg.mxu0
    %v118 = vmax.f32 %v116, 0.0
    %s119 = scalar_lea.vmem [#allocation5], 64
    %v120 = vld [vmem:[%s119] sm:$0xff]
    %v121 = vld [vmem:[%s119 + $0x8] sm:$0xff]
    %v122 = vld [vmem:[%s119 + $0x10] sm:$0xff]
    %v123 = vperm.slane %v58, 2
    %125 = vrot.lane.b32.xlu0 %v118, 88
    %v126 = vpop.permute.xlu0 %125
    %vm127 = vcmask 195584
    %v128 = vsel %vm127, %v126, 0
    %130 = vmatpush.msra.mxu0 0.0
    %131 = vmatpush.msra.mxu0 0.0
    %132 = vmatpush.msra.mxu0 0.0
    %133 = vmatpush.msra.mxu0 0.0
    %134 = vmatpush.msra.mxu0 0.0
    %135 = vmatpush.msra.mxu0 0.0
    %136 = vmatpush.msra.mxu0 0.0
    %137 = vmatpush.msra.mxu0 0.0
    %138 = vmatpush.msra.mxu0 0.0
    %139 = vmatpush.msra.mxu0 0.0
    %140 = vmatpush.msra.mxu0 0.0
    %141 = vmatpush.msra.mxu0 0.0
    %142 = vmatpush.msra.mxu0 0.0
    %143 = vmatpush.msra.mxu0 %v122
    %144 = vmatpush.msra.mxu0 %v121
    %145 = vmatpush.msra.mxu0 %v120
    %146 = vmatmul.f32.gmra.mxu0 %v128
    %v147 = vpop.f32.mrf.mxu0
    %v148 = vadd.f32 %v123, %v147
    %149 = vdwg.mxu0
    %vm150 = vcmask 322816
    %v151 = vsel %vm150, %v116, -inf
    %152 = vmax.xlane.f32.xlu0 %v151
    %v153 = vpop.xlane.xlu0 %152
    %v154 = vsub.f32 %v116, %v153
    %v155 = vmul.f32 %v154, 1.442695
    %v156 = vpow.pop %v155
    %158 = vrot.lane.b32.xlu0 %v156, 96
    %v159 = vpop.permute.xlu0 %158
    %vm161 = vcmask 60416
    %v162 = vsel %vm161, %v159, 0.0
    %163 = vadd.xlane.f32.xlu0 %v162
    %v164 = vpop.xlane.xlu0 %163
    %v165 = vrcp.pop %v164
    %v166 = vmul.f32 %v164, %v165
    %v167 = vsub.f32 1.0, %v166
    %v168 = vmul.f32 %v165, %v167
    %v169 = vadd.f32 %v165, %v168
    %vm170 = vweird.f32 %v164
    %vm171 = vweird.f32 %v165
    %vm172 = vmor %vm170, %vm171
    %v173 = vsel %vm172, %v165, %v169
    %v174 = vand.u32 2147483647, %v164
    %vm175 = vcmp.eq.f32.partialorder %v174, 8.507059e+37
    %v176 = vand.u32 %v164, 2147483648
    %v177 = vor.u32 1.1754944e-38, %v176
    %v178 = vsel %vm175, %v177, %v173
    %v179 = vmul.f32 %v156, %v178
    %v180 = vsel %vm161, %v148, -inf
    %181 = vmax.xlane.f32.xlu0 %v180
    %v182 = vpop.xlane.xlu0 %181
    %v183 = vsub.f32 %v148, %v182
    %v184 = vmul.f32 %v183, 1.442695
    %v185 = vpow.pop %v184
    %v186 = vsel %vm161, %v185, 0.0
    %187 = vadd.xlane.f32.xlu0 %v186
    %v188 = vpop.xlane.xlu0 %187
    %v189 = vrcp.pop %v188
    %v190 = vmul.f32 %v188, %v189
    %v191 = vsub.f32 1.0, %v190
    %v192 = vmul.f32 %v189, %v191
    %v193 = vadd.f32 %v189, %v192
    %vm194 = vweird.f32 %v188
    %vm195 = vweird.f32 %v189
    %vm196 = vmor %vm194, %vm195
    %v197 = vsel %vm196, %v189, %v193
    %v198 = vand.u32 2147483647, %v188
    %vm199 = vcmp.eq.f32.partialorder %v198, 8.507059e+37
    %v200 = vand.u32 %v188, 2147483648
    %v201 = vor.u32 1.1754944e-38, %v200
    %v202 = vsel %vm199, %v201, %v197
    %v203 = vmul.f32 %v185, %v202
    %205 = vrot.lane.b32.xlu0 %v179, 96
    %v206 = vpop.permute.xlu0 %205
    %209 = vrot.lane.b32.xlu0 %v203, 8
    %v210 = vpop.permute.xlu0 %209
    %vm212 = vcmask 64512
    %v213 = vsel %vm212, %v206, %v210
    %s214 = scalar_lea.vmem [#allocation5], 96
    %v215 = vld [vmem:[%s214] sm:$0xff]
    %v216 = vld [vmem:[%s214 + $0x8] sm:$0xff]
    %v218 = vsel %vm63, %v213, 0
    %220 = vmatpush.msra.mxu0 0.0
    %221 = vmatpush.msra.mxu0 0.0
    %222 = vmatpush.msra.mxu0 0.0
    %223 = vmatpush.msra.mxu0 0.0
    %224 = vmatpush.msra.mxu0 0.0
    %225 = vmatpush.msra.mxu0 0.0
    %226 = vmatpush.msra.mxu0 0.0
    %227 = vmatpush.msra.mxu0 0.0
    %228 = vmatpush.msra.mxu0 0.0
    %229 = vmatpush.msra.mxu0 0.0
    %230 = vmatpush.msra.mxu0 0.0
    %231 = vmatpush.msra.mxu0 0.0
    %232 = vmatpush.msra.mxu0 0.0
    %233 = vmatpush.msra.mxu0 0.0
    %234 = vmatpush.msra.mxu0 %v216
    %235 = vmatpush.msra.mxu0 %v215
    %236 = vmatmul.f32.gmra.mxu0 %v218
    %v237 = vpop.f32.mrf.mxu0
    %v238 = vadd.f32 0.0, %v237
    %239 = vdwg.mxu0
    %v240 = vmul.f32 %v238, %v238
    %vm241 = vcmask 125952
    %v242 = vsel %vm241, %v240, 0.0
    %243 = vadd.xlane.f32.xlu0 %v242
    %v244 = vpop.xlane.xlu0 %243
    %v245 = vrcp.pop 16.0
    %v246 = vmul.f32 16.0, %v245
    %v247 = vsub.f32 1.0, %v246
    %v248 = vmul.f32 %v245, %v247
    %v249 = vadd.f32 %v245, %v248
    %vm250 = vweird.f32 %v245
    %v251 = vsel %vm250, %v245, %v249
    %v252 = vmul.f32 %v244, %v251
    %vm253 = vcmask 3072
    %v254 = vsel %vm253, %v252, 0.0
    %255 = vadd.xlane.f32.xlu0 %v254
    %v256 = vpop.xlane.xlu0 %255
    %v257 = vrot.slane %v256, 4
    %v258 = vadd.f32 %v256, %v257
    %v259 = vrot.slane %v258, 2
    %v260 = vadd.f32 %v258, %v259
    %v261 = vrot.slane %v260, 1
    %v262 = vadd.f32 %v260, %v261
    %s263 = vtos %v262
    %v264 = vrcp.pop 4.0
    %v265 = vmul.f32 4.0, %v264
    %v266 = vsub.f32 1.0, %v265
    %v267 = vmul.f32 %v264, %v266
    %v268 = vadd.f32 %v264, %v267
    %vm269 = vweird.f32 %v264
    %v270 = vsel %vm269, %v264, %v268
    %s271 = vtos %v270
    %s272 = smul.f32 %s263, %s271
    %v273 = vstv %s272
    %v274 = vsub.f32 %v252, %v273
    %v275 = vand.u32 2147483647, %v274
    %v276 = vxor.u32 %v275, 2147483648
    %v277 = vmul.f32 %v276, 1.442695
    %v278 = vpow.pop %v277
    %v279 = vadd.f32 %v278, 1.0
    %v280 = vrcp.pop %v279
    %v281 = vmul.f32 %v279, %v280
    %v282 = vsub.f32 1.0, %v281
    %v283 = vmul.f32 %v280, %v282
    %v284 = vadd.f32 %v280, %v283
    %vm285 = vweird.f32 %v279
    %vm286 = vweird.f32 %v280
    %vm287 = vmor %vm285, %vm286
    %v288 = vsel %vm287, %v280, %v284
    %v289 = vand.u32 2147483647, %v279
    %vm290 = vcmp.eq.f32.partialorder %v289, 8.507059e+37
    %v291 = vand.u32 %v279, 2147483648
    %v292 = vor.u32 1.1754944e-38, %v291
    %v293 = vsel %vm290, %v292, %v288
    %v294 = vmul.f32 1.0, %v293
    %v295 = vmul.f32 %v252, -2.0
    %v296 = vmul.f32 %v295, %v294
    %v297 = vxor.u32 %v296, 2147483648
    %v298 = vmul.f32 %v297, 1.442695
    %v299 = vpow.pop %v298
    %v300 = vadd.f32 %v299, 1.0
    %v301 = vrcp.pop %v300
    %v302 = vmul.f32 %v300, %v301
    %v303 = vsub.f32 1.0, %v302
    %v304 = vmul.f32 %v301, %v303
    %v305 = vadd.f32 %v301, %v304
    %vm306 = vweird.f32 %v300
    %vm307 = vweird.f32 %v301
    %vm308 = vmor %vm306, %vm307
    %v309 = vsel %vm308, %v301, %v305
    %v310 = vand.u32 2147483647, %v300
    %vm311 = vcmp.eq.f32.partialorder %v310, 8.507059e+37
    %v312 = vand.u32 %v300, 2147483648
    %v313 = vor.u32 1.1754944e-38, %v312
    %v314 = vsel %vm311, %v313, %v309
    %v315 = vmul.f32 1.0, %v314
    %v316 = vsub.f32 1.0, %v315
    %v317 = vmul.f32 %v315, %v316
    %v318 = vsel %vm253, %v317, 0.0
    %319 = vadd.xlane.f32.xlu0 %v318
    %v320 = vpop.xlane.xlu0 %319
    %v321 = vrot.slane %v320, 4
    %v322 = vadd.f32 %v320, %v321
    %v323 = vrot.slane %v322, 2
    %v324 = vadd.f32 %v322, %v323
    %v325 = vrot.slane %v324, 1
    %v326 = vadd.f32 %v324, %v325
    %s327 = vtos %v326
    %v328 = vrcp.pop 4.0
    %v329 = vmul.f32 4.0, %v328
    %v330 = vsub.f32 1.0, %v329
    %v331 = vmul.f32 %v328, %v330
    %v332 = vadd.f32 %v328, %v331
    %vm333 = vweird.f32 %v328
    %v334 = vsel %vm333, %v328, %v332
    %s335 = vtos %v334
    %s336 = smul.f32 %s327, %s335
    %s337 = smul.f32 %s336, 0.1
    %v338 = vstv %s337
    %v339 = vadd.f32 %v252, %v338
    %v340 = vmul.f32 %v116, %v315
    %v341 = vsub.f32 %v116, %v93
    %v342 = vmul.f32 %v316, %v341
    %v343 = vadd.f32 %v342, %v93
    %v344 = vmax.f32 %v343, 0.0
    %s345 = scalar_lea.vmem [#allocation5], 128
    %v346 = vld [vmem:[%s345] sm:$0xff]
    %v347 = vld [vmem:[%s345 + $0x8] sm:$0xff]
    %v348 = vld [vmem:[%s345 + $0x10] sm:$0xff]
    %v349 = vperm.slane %v58, 3
    %351 = vrot.lane.b32.xlu0 %v344, 88
    %v352 = vpop.permute.xlu0 %351
    %v353 = vsel %vm127, %v352, 0
    %355 = vmatpush.msra.mxu0 0.0
    %356 = vmatpush.msra.mxu0 0.0
    %357 = vmatpush.msra.mxu0 0.0
    %358 = vmatpush.msra.mxu0 0.0
    %359 = vmatpush.msra.mxu0 0.0
    %360 = vmatpush.msra.mxu0 0.0
    %361 = vmatpush.msra.mxu0 0.0
    %362 = vmatpush.msra.mxu0 0.0
    %363 = vmatpush.msra.mxu0 0.0
    %364 = vmatpush.msra.mxu0 0.0
    %365 = vmatpush.msra.mxu0 0.0
    %366 = vmatpush.msra.mxu0 0.0
    %367 = vmatpush.msra.mxu0 0.0
    %368 = vmatpush.msra.mxu0 %v348
    %369 = vmatpush.msra.mxu0 %v347
    %370 = vmatpush.msra.mxu0 %v346
    %371 = vmatmul.f32.gmra.mxu0 %v353
    %v372 = vpop.f32.mrf.mxu0
    %v373 = vadd.f32 %v349, %v372
    %374 = vdwg.mxu0
    %v375 = vmax.f32 %v373, 0.0
    %s376 = scalar_lea.vmem [#allocation5], 160
    %v377 = vld [vmem:[%s376] sm:$0xff]
    %v378 = vld [vmem:[%s376 + $0x8] sm:$0xff]
    %v379 = vperm.slane %v58, 4
    %381 = vrot.lane.b32.xlu0 %v375, 88
    %v382 = vpop.permute.xlu0 %381
    %v383 = vsel %vm63, %v382, 0
    %385 = vmatpush.msra.mxu0 0.0
    %386 = vmatpush.msra.mxu0 0.0
    %387 = vmatpush.msra.mxu0 0.0
    %388 = vmatpush.msra.mxu0 0.0
    %389 = vmatpush.msra.mxu0 0.0
    %390 = vmatpush.msra.mxu0 0.0
    %391 = vmatpush.msra.mxu0 0.0
    %392 = vmatpush.msra.mxu0 0.0
    %393 = vmatpush.msra.mxu0 0.0
    %394 = vmatpush.msra.mxu0 0.0
    %395 = vmatpush.msra.mxu0 0.0
    %396 = vmatpush.msra.mxu0 0.0
    %397 = vmatpush.msra.mxu0 0.0
    %398 = vmatpush.msra.mxu0 0.0
    %399 = vmatpush.msra.mxu0 %v378
    %400 = vmatpush.msra.mxu0 %v377
    %401 = vmatmul.f32.gmra.mxu0 %v383
    %v402 = vpop.f32.mrf.mxu0
    %v403 = vadd.f32 %v379, %v402
    %404 = vdwg.mxu0
    %v405 = vsel %vm150, %v373, -inf
    %406 = vmax.xlane.f32.xlu0 %v405
    %v407 = vpop.xlane.xlu0 %406
    %v408 = vsub.f32 %v373, %v407
    %v409 = vmul.f32 %v408, 1.442695
    %v410 = vpow.pop %v409
    %412 = vrot.lane.b32.xlu0 %v410, 96
    %v413 = vpop.permute.xlu0 %412
    %v415 = vsel %vm161, %v413, 0.0
    %416 = vadd.xlane.f32.xlu0 %v415
    %v417 = vpop.xlane.xlu0 %416
    %v418 = vrcp.pop %v417
    %v419 = vmul.f32 %v417, %v418
    %v420 = vsub.f32 1.0, %v419
    %v421 = vmul.f32 %v418, %v420
    %v422 = vadd.f32 %v418, %v421
    %vm423 = vweird.f32 %v417
    %vm424 = vweird.f32 %v418
    %vm425 = vmor %vm423, %vm424
    %v426 = vsel %vm425, %v418, %v422
    %v427 = vand.u32 2147483647, %v417
    %vm428 = vcmp.eq.f32.partialorder %v427, 8.507059e+37
    %v429 = vand.u32 %v417, 2147483648
    %v430 = vor.u32 1.1754944e-38, %v429
    %v431 = vsel %vm428, %v430, %v426
    %v432 = vmul.f32 %v410, %v431
    %v433 = vsel %vm161, %v403, -inf
    %434 = vmax.xlane.f32.xlu0 %v433
    %v435 = vpop.xlane.xlu0 %434
    %v436 = vsub.f32 %v403, %v435
    %v437 = vmul.f32 %v436, 1.442695
    %v438 = vpow.pop %v437
    %v439 = vsel %vm161, %v438, 0.0
    %440 = vadd.xlane.f32.xlu0 %v439
    %v441 = vpop.xlane.xlu0 %440
    %v442 = vrcp.pop %v441
    %v443 = vmul.f32 %v441, %v442
    %v444 = vsub.f32 1.0, %v443
    %v445 = vmul.f32 %v442, %v444
    %v446 = vadd.f32 %v442, %v445
    %vm447 = vweird.f32 %v441
    %vm448 = vweird.f32 %v442
    %vm449 = vmor %vm447, %vm448
    %v450 = vsel %vm449, %v442, %v446
    %v451 = vand.u32 2147483647, %v441
    %vm452 = vcmp.eq.f32.partialorder %v451, 8.507059e+37
    %v453 = vand.u32 %v441, 2147483648
    %v454 = vor.u32 1.1754944e-38, %v453
    %v455 = vsel %vm452, %v454, %v450
    %v456 = vmul.f32 %v438, %v455
    %458 = vrot.lane.b32.xlu0 %v432, 96
    %v459 = vpop.permute.xlu0 %458
    %462 = vrot.lane.b32.xlu0 %v456, 8
    %v463 = vpop.permute.xlu0 %462
    %v465 = vsel %vm212, %v459, %v463
    %s466 = scalar_lea.vmem [#allocation5], 192
    %v467 = vld [vmem:[%s466] sm:$0xff]
    %v468 = vld [vmem:[%s466 + $0x8] sm:$0xff]
    %v470 = vsel %vm63, %v465, 0
    %472 = vmatpush.msra.mxu0 0.0
    %473 = vmatpush.msra.mxu0 0.0
    %474 = vmatpush.msra.mxu0 0.0
    %475 = vmatpush.msra.mxu0 0.0
    %476 = vmatpush.msra.mxu0 0.0
    %477 = vmatpush.msra.mxu0 0.0
    %478 = vmatpush.msra.mxu0 0.0
    %479 = vmatpush.msra.mxu0 0.0
    %480 = vmatpush.msra.mxu0 0.0
    %481 = vmatpush.msra.mxu0 0.0
    %482 = vmatpush.msra.mxu0 0.0
    %483 = vmatpush.msra.mxu0 0.0
    %484 = vmatpush.msra.mxu0 0.0
    %485 = vmatpush.msra.mxu0 0.0
    %486 = vmatpush.msra.mxu0 %v468
    %487 = vmatpush.msra.mxu0 %v467
    %488 = vmatmul.f32.gmra.mxu0 %v470
    %v489 = vpop.f32.mrf.mxu0
    %v490 = vadd.f32 0.0, %v489
    %491 = vdwg.mxu0
    %v492 = vmul.f32 %v490, %v490
    %vm493 = vcmask 191488
    %v494 = vsel %vm493, %v492, 0.0
    %495 = vadd.xlane.f32.xlu0 %v494
    %v496 = vpop.xlane.xlu0 %495
    %v497 = vrcp.pop 24.0
    %v498 = vmul.f32 24.0, %v497
    %v499 = vsub.f32 1.0, %v498
    %v500 = vmul.f32 %v497, %v499
    %v501 = vadd.f32 %v497, %v500
    %vm502 = vweird.f32 %v497
    %v503 = vsel %vm502, %v497, %v501
    %v504 = vmul.f32 %v496, %v503
    %v505 = vsel %vm253, %v504, 0.0
    %506 = vadd.xlane.f32.xlu0 %v505
    %v507 = vpop.xlane.xlu0 %506
    %v508 = vrot.slane %v507, 4
    %v509 = vadd.f32 %v507, %v508
    %v510 = vrot.slane %v509, 2
    %v511 = vadd.f32 %v509, %v510
    %v512 = vrot.slane %v511, 1
    %v513 = vadd.f32 %v511, %v512
    %s514 = vtos %v513
    %v515 = vrcp.pop 4.0
    %v516 = vmul.f32 4.0, %v515
    %v517 = vsub.f32 1.0, %v516
    %v518 = vmul.f32 %v515, %v517
    %v519 = vadd.f32 %v515, %v518
    %vm520 = vweird.f32 %v515
    %v521 = vsel %vm520, %v515, %v519
    %s522 = vtos %v521
    %s523 = smul.f32 %s514, %s522
    %v524 = vstv %s523
    %v525 = vsub.f32 %v504, %v524
    %v526 = vand.u32 2147483647, %v525
    %v527 = vxor.u32 %v526, 2147483648
    %v528 = vmul.f32 %v527, 1.442695
    %v529 = vpow.pop %v528
    %v530 = vadd.f32 %v529, 1.0
    %v531 = vrcp.pop %v530
    %v532 = vmul.f32 %v530, %v531
    %v533 = vsub.f32 1.0, %v532
    %v534 = vmul.f32 %v531, %v533
    %v535 = vadd.f32 %v531, %v534
    %vm536 = vweird.f32 %v530
    %vm537 = vweird.f32 %v531
    %vm538 = vmor %vm536, %vm537
    %v539 = vsel %vm538, %v531, %v535
    %v540 = vand.u32 2147483647, %v530
    %vm541 = vcmp.eq.f32.partialorder %v540, 8.507059e+37
    %v542 = vand.u32 %v530, 2147483648
    %v543 = vor.u32 1.1754944e-38, %v542
    %v544 = vsel %vm541, %v543, %v539
    %v545 = vmul.f32 1.0, %v544
    %v546 = vmul.f32 %v504, -2.0
    %v547 = vmul.f32 %v546, %v545
    %v548 = vxor.u32 %v547, 2147483648
    %v549 = vmul.f32 %v548, 1.442695
    %v550 = vpow.pop %v549
    %v551 = vadd.f32 %v550, 1.0
    %v552 = vrcp.pop %v551
    %v553 = vmul.f32 %v551, %v552
    %v554 = vsub.f32 1.0, %v553
    %v555 = vmul.f32 %v552, %v554
    %v556 = vadd.f32 %v552, %v555
    %vm557 = vweird.f32 %v551
    %vm558 = vweird.f32 %v552
    %vm559 = vmor %vm557, %vm558
    %v560 = vsel %vm559, %v552, %v556
    %v561 = vand.u32 2147483647, %v551
    %vm562 = vcmp.eq.f32.partialorder %v561, 8.507059e+37
    %v563 = vand.u32 %v551, 2147483648
    %v564 = vor.u32 1.1754944e-38, %v563
    %v565 = vsel %vm562, %v564, %v560
    %v566 = vmul.f32 1.0, %v565
    %v567 = vsub.f32 1.0, %v566
    %v568 = vmul.f32 %v566, %v567
    %v569 = vsel %vm253, %v568, 0.0
    %570 = vadd.xlane.f32.xlu0 %v569
    %v571 = vpop.xlane.xlu0 %570
    %v572 = vrot.slane %v571, 4
    %v573 = vadd.f32 %v571, %v572
    %v574 = vrot.slane %v573, 2
    %v575 = vadd.f32 %v573, %v574
    %v576 = vrot.slane %v575, 1
    %v577 = vadd.f32 %v575, %v576
    %s578 = vtos %v577
    %v579 = vrcp.pop 4.0
    %v580 = vmul.f32 4.0, %v579
    %v581 = vsub.f32 1.0, %v580
    %v582 = vmul.f32 %v579, %v581
    %v583 = vadd.f32 %v579, %v582
    %vm584 = vweird.f32 %v579
    %v585 = vsel %vm584, %v579, %v583
    %s586 = vtos %v585
    %s587 = smul.f32 %s578, %s586
    %s588 = smul.f32 %s587, 0.1
    %v589 = vstv %s588
    %v590 = vadd.f32 %v504, %v589
    %v591 = vmul.f32 %v373, %v566
    %v592 = vsub.f32 %v373, %v349
    %v593 = vadd.f32 %v340, %v591
    %v594 = vmul.f32 %v567, %v592
    %v595 = vadd.f32 %v594, %v349
    %v596 = vmax.f32 %v595, 0.0
    %s597 = scalar_lea.vmem [#allocation5], 224
    %v598 = vld [vmem:[%s597] sm:$0xff]
    %v599 = vld [vmem:[%s597 + $0x8] sm:$0xff]
    %v600 = vperm.slane %v58, 5
    %602 = vrot.lane.b32.xlu0 %v596, 88
    %v603 = vpop.permute.xlu0 %602
    %v604 = vsel %vm63, %v603, 0
    %606 = vmatpush.msra.mxu0 0.0
    %607 = vmatpush.msra.mxu0 0.0
    %608 = vmatpush.msra.mxu0 0.0
    %609 = vmatpush.msra.mxu0 0.0
    %610 = vmatpush.msra.mxu0 0.0
    %611 = vmatpush.msra.mxu0 0.0
    %612 = vmatpush.msra.mxu0 0.0
    %613 = vmatpush.msra.mxu0 0.0
    %614 = vmatpush.msra.mxu0 0.0
    %615 = vmatpush.msra.mxu0 0.0
    %616 = vmatpush.msra.mxu0 0.0
    %617 = vmatpush.msra.mxu0 0.0
    %618 = vmatpush.msra.mxu0 0.0
    %619 = vmatpush.msra.mxu0 0.0
    %620 = vmatpush.msra.mxu0 %v599
    %621 = vmatpush.msra.mxu0 %v598
    %622 = vmatmul.f32.gmra.mxu0 %v604
    %v623 = vpop.f32.mrf.mxu0
    %v624 = vadd.f32 %v600, %v623
    %625 = vdwg.mxu0
    %v626 = vadd.f32 %v593, %v624
    %s627 = scalar_lea.vmem [#allocation5], 256
    %v628 = vld [vmem:[%s627] sm:$0xff]
    %v629 = vld [vmem:[%s627 + $0x8] sm:$0xff]
    %v630 = vld [vmem:[%s627 + $0x10] sm:$0xff]
    %v631 = vld [vmem:[%s627 + $0x18] sm:$0xff]
    %v632 = vperm.slane %v58, 6
    %v634 = vsel %vm94, %v626, 0
    %636 = vmatpush.msra.mxu0 0.0
    %637 = vmatpush.msra.mxu0 0.0
    %638 = vmatpush.msra.mxu0 0.0
    %639 = vmatpush.msra.mxu0 0.0
    %640 = vmatpush.msra.mxu0 0.0
    %641 = vmatpush.msra.mxu0 0.0
    %642 = vmatpush.msra.mxu0 0.0
    %643 = vmatpush.msra.mxu0 0.0
    %644 = vmatpush.msra.mxu0 0.0
    %645 = vmatpush.msra.mxu0 0.0
    %646 = vmatpush.msra.mxu0 0.0
    %647 = vmatpush.msra.mxu0 0.0
    %648 = vmatpush.msra.mxu0 %v631
    %649 = vmatpush.msra.mxu0 %v630
    %650 = vmatpush.msra.mxu0 %v629
    %651 = vmatpush.msra.mxu0 %v628
    %652 = vmatmul.f32.gmra.mxu0 %v634
    %v653 = vpop.f32.mrf.mxu0
    %v654 = vadd.f32 %v632, %v653
    %655 = vdwg.mxu0
    %v656 = vsel %vm212, %v654, %v339
    %vm657 = vcmask 72704
    %v658 = vsel %vm657, %v656, %v590
    %vm659 = vcmask 76800
    %660 = vst.msk [vmem:[#allocation8] sm:$0xf] %vm659, %v658
    // Predicated region
    $region26: #{tpu_custom_call.1} parent=1 // pred_check
      _
    $region27: #{tpu_custom_call.1} parent=1 // pred_check_branch
      %662 = sbr.rel (0) target = $region29
    $region28: #{tpu_custom_call.1} parent=1 // pred_region
      %664 = vsyncadd [#allocation4], 0
      %s666 = sshll.u32 [#allocation8], 4
      %s667 = int_to_ptr.vmem [resolvable:$true] %s666
      %s668 = sshll.u32 %s3, 4
      %s669 = int_to_ptr.hbm [resolvable:$true] %s668
      %671 = dma.vmem_to_hbm [thread:$0]  %s667, 64, %s669, [#allocation4]
    $region29: #{tpu_custom_call.1} parent=1 // pred_fallthru
      _
    // Predicated region
    $region30: #{tpu_custom_call.1} parent=1 // pred_check
      _
    $region31: #{tpu_custom_call.1} parent=1 // pred_check_branch
      %673 = sbr.rel (0) target = $region33
    $region32: #{tpu_custom_call.1} parent=1 // pred_region
      %675 = dma.done [#allocation4], 64
    $region33: #{tpu_custom_call.1} parent=1 // pred_fallthru
      _
    %676 = vsyncpa [#allocation3], 1
    %677 = vsyncpa [#allocation6], 1
    %678 = vsyncpa [#allocation4], 1

</llo_original>
